<compile_context>
chip_gen: v6e
topology: v6e:2x2x1
jax: 0.10.0
libtpu: 0.0.40
codegen_flags: <defaults>
</compile_context>

<pallas_src>
import functools

import jax
import jax.numpy as jnp
from jax.experimental import pallas as pl
from jax.experimental.pallas import tpu as pltpu

D_PAD = 128   # uniform padded lane width for weights / biases / packed output


# ----------------------------- Pallas kernel ---------------------------------
def _mhae_kernel(x_ref, nrm_ref, rows_ref, w_ref, out_ref):
    x = x_ref[...]                      # (TB, F)
    F = x.shape[1]

    # --- ZScore normalize: (x - mu) * inv_sigma (inv_sigma precomputed) ---
    nrm = nrm_ref[...]                  # (8, F): row0 = mu, row1 = 1/sigma
    mu_n, inv_sig = nrm[0:1, :], nrm[1:2, :]
    xn = (x - mu_n) * inv_sig           # (TB, F)

    rows = rows_ref[...]                # (8, D): padded/shifted bias + denorm rows
    eb0, eb1 = rows[0:1], rows[1:2]
    db0, db1 = rows[2:3], rows[3:4]     # db1 pre-shifted to lanes [L, L+F)
    sig_s, mu_s = rows[4:5], rows[5:6]  # sigma/mu pre-shifted to lanes [L, L+F)
    rb0, rb1 = rows[6:7], rows[7:8]     # rb1 pre-shifted to lanes [L+F, L+F+R)

    # --- Encoder: Linear+ReLU, Linear ---
    w0 = w_ref[0, :F, :]                # (F, D) valid rows of the padded slot (static slice)
    h = jnp.maximum(jnp.dot(xn, w0, preferred_element_type=jnp.float32) + eb0, 0.0)
    enc = jnp.dot(h, w_ref[1], preferred_element_type=jnp.float32) + eb1   # lanes [0, L)

    # --- Decoder: Linear+ReLU, Linear (output pre-shifted to lanes [L, L+F)) ---
    d = jnp.maximum(jnp.dot(enc, w_ref[2], preferred_element_type=jnp.float32) + db0, 0.0)
    dec = jnp.dot(d, w_ref[3], preferred_element_type=jnp.float32) + db1
    ae = dec * sig_s + mu_s             # denormalize; nonzero only in [L, L+F)

    # --- L2-normalize latent per row: mul by rsqrt (EUP) instead of sqrt+div ---
    inv_norm = jax.lax.rsqrt(jnp.sum(enc * enc, axis=-1, keepdims=True))
    aux = enc * inv_norm                # nonzero only in [0, L)

    # --- Regressor head (output pre-shifted to lanes [L+F, L+F+R)) ---
    r = jnp.maximum(jnp.dot(aux, w_ref[4], preferred_element_type=jnp.float32) + rb0, 0.0)
    reg = jnp.dot(r, w_ref[5], preferred_element_type=jnp.float32) + rb1

    # Heads live in disjoint lane bands -> pack with adds; single lane-dense store.
    out_ref[...] = aux + ae + reg


# ----------------------------- wrapper ----------------------------------------
@functools.partial(jax.jit, static_argnames=("L", "R"))
def mhae_forward(x, nrm, rows, wstack, *, L, R):
    """Fused MultiHeadAutoEncoderRegressor forward. Returns dict of the 3 heads."""
    B, F = x.shape
    D = wstack.shape[-1]
    TB = B if B <= 256 else 256         # batch tile (full array if small)

    out = pl.pallas_call(
        _mhae_kernel,
        out_shape=jax.ShapeDtypeStruct((B, D), jnp.float32),
        grid=(pl.cdiv(B, TB),),
        in_specs=[
            pl.BlockSpec((TB, F), lambda i: (i, 0)),          # x: streamed per batch tile
            pl.BlockSpec(nrm.shape, lambda i: (0, 0)),        # mu / inv_sigma (resident)
            pl.BlockSpec(rows.shape, lambda i: (0, 0)),       # packed bias rows (resident)
            pl.BlockSpec(wstack.shape, lambda i: (0, 0, 0)),  # packed weight slab (resident)
        ],
        out_specs=pl.BlockSpec((TB, D), lambda i: (i, 0)),    # single lane-dense output
        compiler_params=pltpu.CompilerParams(
            dimension_semantics=("parallel",)),
    )(x, nrm, rows, wstack)

    return dict(
        encoder=out[:, :L],
        autoencoder=out[:, L:L + F],
        regression=out[:, L + F:L + F + R],
    )


# ----------------------------- one-time param packing -------------------------
def pack_params(p):
    """One-time layout transform: pad/shift weights & biases into a few packed buffers."""
    F = p["mu"].shape[1]
    H1 = p["ew0"].shape[1]
    L = p["ew1"].shape[1]
    H2 = p["rw0"].shape[1]
    R = p["rw1"].shape[1]
    D = D_PAD
    assert max(F, H1, L, H2, R) <= D
    assert L + F + R <= D

    def place_w(w, c0):
        full = jnp.zeros((D, D), jnp.float32)
        return full.at[: w.shape[0], c0:c0 + w.shape[1]].set(w)

    wstack = jnp.stack([
        place_w(p["ew0"], 0),
        place_w(p["ew1"], 0),
        place_w(p["dw0"], 0),
        place_w(p["dw1"], L),        # decoder output shifted into lanes [L, L+F)
        place_w(p["rw0"], 0),
        place_w(p["rw1"], L + F),    # regression output shifted into [L+F, L+F+R)
    ])

    def place_r(v, c0):
        full = jnp.zeros((D,), jnp.float32)
        return full.at[c0:c0 + v.shape[-1]].set(v.reshape(-1))

    rows = jnp.stack([
        place_r(p["eb0"], 0),
        place_r(p["eb1"], 0),
        place_r(p["db0"], 0),
        place_r(p["db1"], L),
        place_r(p["sigma"], L),
        place_r(p["mu"], L),
        place_r(p["rb0"], 0),
        place_r(p["rb1"], L + F),
    ])                               # (8, D)

    inv_sigma = 1.0 / p["sigma"]
    nrm = jnp.concatenate(
        [p["mu"], inv_sigma] + [jnp.zeros((1, F), jnp.float32)] * 6, axis=0)  # (8, F)

    return nrm, rows, wstack


# ----------------------------- pure-JAX reference -----------------------------
def mhae_reference(x, p):
    xn = (x - p["mu"]) / p["sigma"]
    h = jnp.maximum(xn @ p["ew0"] + p["eb0"], 0.0)
    enc = h @ p["ew1"] + p["eb1"]
    d = jnp.maximum(enc @ p["dw0"] + p["db0"], 0.0)
    dec_raw = d @ p["dw1"] + p["db1"]
    ae = dec_raw * p["sigma"] + p["mu"]
    aux = enc / jnp.linalg.norm(enc, axis=1, keepdims=True)
    r = jnp.maximum(aux @ p["rw0"] + p["rb0"], 0.0)
    reg = r @ p["rw1"] + p["rb1"]
    return dict(encoder=aux, autoencoder=ae, regression=reg)


# ----------------------------- param init ------------------------------------
def init_params(key, F, H1, L, H2, R):
    ks = jax.random.split(key, 16)

    def lin(kw, kb, fan_in, fan_out):
        bound = 1.0 / jnp.sqrt(fan_in)
        w = jax.random.uniform(kw, (fan_in, fan_out), jnp.float32, -bound, bound)
        b = jax.random.uniform(kb, (1, fan_out), jnp.float32, -bound, bound)
        return w, b

    ew0, eb0 = lin(ks[0], ks[1], F, H1)
    ew1, eb1 = lin(ks[2], ks[3], H1, L)
    dw0, db0 = lin(ks[4], ks[5], L, H1)
    dw1, db1 = lin(ks[6], ks[7], H1, F)
    rw0, rb0 = lin(ks[8], ks[9], L, H2)
    rw1, rb1 = lin(ks[10], ks[11], H2, R)
    mu = jax.random.normal(ks[12], (1, F), jnp.float32)
    sigma = jnp.abs(jax.random.normal(ks[13], (1, F), jnp.float32)) + 0.5

    return dict(mu=mu, sigma=sigma,
                ew0=ew0, eb0=eb0, ew1=ew1, eb1=eb1,
                dw0=dw0, db0=db0, dw1=dw1, db1=db1,
                rw0=rw0, rb0=rb0, rw1=rw1, rb1=rb1)


# ----------------------------- main -------------------------------------------
if __name__ == "__main__":
    B, F, H1, L, H2, R = 8, 32, 64, 16, 64, 8

    key = jax.random.PRNGKey(0)
    kx, kp = jax.random.split(key)
    x = jax.random.normal(kx, (B, F), jnp.float32)
    params = init_params(kp, F, H1, L, H2, R)

    nrm, rows, wstack = pack_params(params)       # one-time layout transform
    out = mhae_forward(x, nrm, rows, wstack, L=L, R=R)
    jax.block_until_ready(out)

    ref = mhae_reference(x, params)
    for name in ("encoder", "autoencoder", "regression"):
        assert out[name].shape == ref[name].shape, name
        assert jnp.allclose(out[name], ref[name], atol=1e-4, rtol=1e-4), name

    print("KERNEL_OK")
</pallas_src>

<mosaic_0001>
module attributes {stable_mosaic.version = 11 : i64} {
  func.func @_mhae_kernel(%arg0: i32, %arg1: memref<8x32xf32, #tpu.memory_space<vmem>>, %arg2: memref<8x32xf32, #tpu.memory_space<vmem>>, %arg3: memref<8x128xf32, #tpu.memory_space<vmem>>, %arg4: memref<6x128x128xf32, #tpu.memory_space<vmem>>, %arg5: memref<8x128xf32, #tpu.memory_space<vmem>>) attributes {dimension_semantics = [#tpu.dimension_semantics<parallel>], iteration_bounds = array<i64: 1>, scalar_prefetch = 0 : i64, scratch_operands = 0 : i64, tpu.core_type = #tpu.core_type<tc>, window_params = [{transform_indices = @transform_0, window_bounds = array<i64: 8, 32>}, {pipeline_mode = #tpu.pipeline_mode<synchronous>, transform_indices = @transform_1, window_bounds = array<i64: 8, 32>}, {pipeline_mode = #tpu.pipeline_mode<synchronous>, transform_indices = @transform_2, window_bounds = array<i64: 8, 128>}, {pipeline_mode = #tpu.pipeline_mode<synchronous>, transform_indices = @transform_3, window_bounds = array<i64: 6, 128, 128>}, {transform_indices = @transform_4, window_bounds = array<i64: 8, 128>}]} {
    %c0 = arith.constant 0 : index
    %c0_0 = arith.constant 0 : index
    %0 = vector.load %arg1[%c0, %c0_0] : memref<8x32xf32, #tpu.memory_space<vmem>>, vector<8x32xf32>
    %c0_1 = arith.constant 0 : index
    %c0_2 = arith.constant 0 : index
    %1 = vector.load %arg2[%c0_1, %c0_2] : memref<8x32xf32, #tpu.memory_space<vmem>>, vector<8x32xf32>
    %2 = vector.extract_strided_slice %1 {offsets = [0, 0], sizes = [1, 32], strides = [1, 1]} : vector<8x32xf32> to vector<1x32xf32>
    %3 = vector.extract_strided_slice %1 {offsets = [1, 0], sizes = [1, 32], strides = [1, 1]} : vector<8x32xf32> to vector<1x32xf32>
    %4 = vector.broadcast %2 : vector<1x32xf32> to vector<8x32xf32>
    %5 = arith.subf %0, %4 : vector<8x32xf32>
    %6 = vector.broadcast %3 : vector<1x32xf32> to vector<8x32xf32>
    %7 = arith.mulf %5, %6 : vector<8x32xf32>
    %c0_3 = arith.constant 0 : index
    %c0_4 = arith.constant 0 : index
    %8 = vector.load %arg3[%c0_3, %c0_4] : memref<8x128xf32, #tpu.memory_space<vmem>>, vector<8x128xf32>
    %9 = vector.extract_strided_slice %8 {offsets = [0, 0], sizes = [1, 128], strides = [1, 1]} : vector<8x128xf32> to vector<1x128xf32>
    %10 = vector.extract_strided_slice %8 {offsets = [1, 0], sizes = [1, 128], strides = [1, 1]} : vector<8x128xf32> to vector<1x128xf32>
    %11 = vector.extract_strided_slice %8 {offsets = [2, 0], sizes = [1, 128], strides = [1, 1]} : vector<8x128xf32> to vector<1x128xf32>
    %12 = vector.extract_strided_slice %8 {offsets = [3, 0], sizes = [1, 128], strides = [1, 1]} : vector<8x128xf32> to vector<1x128xf32>
    %13 = vector.extract_strided_slice %8 {offsets = [4, 0], sizes = [1, 128], strides = [1, 1]} : vector<8x128xf32> to vector<1x128xf32>
    %14 = vector.extract_strided_slice %8 {offsets = [5, 0], sizes = [1, 128], strides = [1, 1]} : vector<8x128xf32> to vector<1x128xf32>
    %15 = vector.extract_strided_slice %8 {offsets = [6, 0], sizes = [1, 128], strides = [1, 1]} : vector<8x128xf32> to vector<1x128xf32>
    %16 = vector.extract_strided_slice %8 {offsets = [7, 0], sizes = [1, 128], strides = [1, 1]} : vector<8x128xf32> to vector<1x128xf32>
    %c0_5 = arith.constant 0 : index
    %c0_6 = arith.constant 0 : index
    %c0_7 = arith.constant 0 : index
    %17 = vector.load %arg4[%c0_5, %c0_6, %c0_7] : memref<6x128x128xf32, #tpu.memory_space<vmem>>, vector<1x32x128xf32>
    %18 = vector.shape_cast %17 : vector<1x32x128xf32> to vector<32x128xf32>
    %cst = arith.constant dense<0.000000e+00> : vector<8x128xf32>
    %19 = tpu.matmul %7, %18, %cst {dimension_numbers = #tpu.dot_dimension_numbers<[1], [0], [0], [1], [0, 0, 1, 1], [], []>} : vector<8x32xf32>, vector<32x128xf32>, vector<8x128xf32> -> vector<8x128xf32>
    %20 = vector.broadcast %9 : vector<1x128xf32> to vector<8x128xf32>
    %21 = arith.addf %19, %20 : vector<8x128xf32>
    %cst_8 = arith.constant 0.000000e+00 : f32
    %22 = vector.broadcast %cst_8 : f32 to vector<8x128xf32>
    %23 = arith.maximumf %21, %22 : vector<8x128xf32>
    %c1 = arith.constant 1 : index
    %c0_9 = arith.constant 0 : index
    %c0_10 = arith.constant 0 : index
    %24 = vector.load %arg4[%c1, %c0_9, %c0_10] : memref<6x128x128xf32, #tpu.memory_space<vmem>>, vector<1x128x128xf32>
    %25 = vector.shape_cast %24 : vector<1x128x128xf32> to vector<128x128xf32>
    %cst_11 = arith.constant dense<0.000000e+00> : vector<8x128xf32>
    %26 = tpu.matmul %23, %25, %cst_11 {dimension_numbers = #tpu.dot_dimension_numbers<[1], [0], [0], [1], [0, 0, 1, 1], [], []>} : vector<8x128xf32>, vector<128x128xf32>, vector<8x128xf32> -> vector<8x128xf32>
    %27 = vector.broadcast %10 : vector<1x128xf32> to vector<8x128xf32>
    %28 = arith.addf %26, %27 : vector<8x128xf32>
    %c2 = arith.constant 2 : index
    %c0_12 = arith.constant 0 : index
    %c0_13 = arith.constant 0 : index
    %29 = vector.load %arg4[%c2, %c0_12, %c0_13] : memref<6x128x128xf32, #tpu.memory_space<vmem>>, vector<1x128x128xf32>
    %30 = vector.shape_cast %29 : vector<1x128x128xf32> to vector<128x128xf32>
    %cst_14 = arith.constant dense<0.000000e+00> : vector<8x128xf32>
    %31 = tpu.matmul %28, %30, %cst_14 {dimension_numbers = #tpu.dot_dimension_numbers<[1], [0], [0], [1], [0, 0, 1, 1], [], []>} : vector<8x128xf32>, vector<128x128xf32>, vector<8x128xf32> -> vector<8x128xf32>
    %32 = vector.broadcast %11 : vector<1x128xf32> to vector<8x128xf32>
    %33 = arith.addf %31, %32 : vector<8x128xf32>
    %cst_15 = arith.constant 0.000000e+00 : f32
    %34 = vector.broadcast %cst_15 : f32 to vector<8x128xf32>
    %35 = arith.maximumf %33, %34 : vector<8x128xf32>
    %c3 = arith.constant 3 : index
    %c0_16 = arith.constant 0 : index
    %c0_17 = arith.constant 0 : index
    %36 = vector.load %arg4[%c3, %c0_16, %c0_17] : memref<6x128x128xf32, #tpu.memory_space<vmem>>, vector<1x128x128xf32>
    %37 = vector.shape_cast %36 : vector<1x128x128xf32> to vector<128x128xf32>
    %cst_18 = arith.constant dense<0.000000e+00> : vector<8x128xf32>
    %38 = tpu.matmul %35, %37, %cst_18 {dimension_numbers = #tpu.dot_dimension_numbers<[1], [0], [0], [1], [0, 0, 1, 1], [], []>} : vector<8x128xf32>, vector<128x128xf32>, vector<8x128xf32> -> vector<8x128xf32>
    %39 = vector.broadcast %12 : vector<1x128xf32> to vector<8x128xf32>
    %40 = arith.addf %38, %39 : vector<8x128xf32>
    %41 = vector.broadcast %13 : vector<1x128xf32> to vector<8x128xf32>
    %42 = arith.mulf %40, %41 : vector<8x128xf32>
    %43 = vector.broadcast %14 : vector<1x128xf32> to vector<8x128xf32>
    %44 = arith.addf %42, %43 : vector<8x128xf32>
    %45 = arith.mulf %28, %28 : vector<8x128xf32>
    %cst_19 = arith.constant dense<0.000000e+00> : vector<8xf32>
    %46 = vector.multi_reduction <add>, %45, %cst_19 [1] : vector<8x128xf32> to vector<8xf32>
    %47 = vector.shape_cast %46 : vector<8xf32> to vector<8x1xf32>
    %48 = math.rsqrt %47 : vector<8x1xf32>
    %49 = vector.broadcast %48 : vector<8x1xf32> to vector<8x128xf32>
    %50 = arith.mulf %28, %49 : vector<8x128xf32>
    %c4 = arith.constant 4 : index
    %c0_20 = arith.constant 0 : index
    %c0_21 = arith.constant 0 : index
    %51 = vector.load %arg4[%c4, %c0_20, %c0_21] : memref<6x128x128xf32, #tpu.memory_space<vmem>>, vector<1x128x128xf32>
    %52 = vector.shape_cast %51 : vector<1x128x128xf32> to vector<128x128xf32>
    %cst_22 = arith.constant dense<0.000000e+00> : vector<8x128xf32>
    %53 = tpu.matmul %50, %52, %cst_22 {dimension_numbers = #tpu.dot_dimension_numbers<[1], [0], [0], [1], [0, 0, 1, 1], [], []>} : vector<8x128xf32>, vector<128x128xf32>, vector<8x128xf32> -> vector<8x128xf32>
    %54 = vector.broadcast %15 : vector<1x128xf32> to vector<8x128xf32>
    %55 = arith.addf %53, %54 : vector<8x128xf32>
    %cst_23 = arith.constant 0.000000e+00 : f32
    %56 = vector.broadcast %cst_23 : f32 to vector<8x128xf32>
    %57 = arith.maximumf %55, %56 : vector<8x128xf32>
    %c5 = arith.constant 5 : index
    %c0_24 = arith.constant 0 : index
    %c0_25 = arith.constant 0 : index
    %58 = vector.load %arg4[%c5, %c0_24, %c0_25] : memref<6x128x128xf32, #tpu.memory_space<vmem>>, vector<1x128x128xf32>
    %59 = vector.shape_cast %58 : vector<1x128x128xf32> to vector<128x128xf32>
    %cst_26 = arith.constant dense<0.000000e+00> : vector<8x128xf32>
    %60 = tpu.matmul %57, %59, %cst_26 {dimension_numbers = #tpu.dot_dimension_numbers<[1], [0], [0], [1], [0, 0, 1, 1], [], []>} : vector<8x128xf32>, vector<128x128xf32>, vector<8x128xf32> -> vector<8x128xf32>
    %61 = vector.broadcast %16 : vector<1x128xf32> to vector<8x128xf32>
    %62 = arith.addf %60, %61 : vector<8x128xf32>
    %63 = arith.addf %50, %44 : vector<8x128xf32>
    %64 = arith.addf %63, %62 : vector<8x128xf32>
    %c0_27 = arith.constant 0 : index
    %c0_28 = arith.constant 0 : index
    %65 = vector.load %arg5[%c0_27, %c0_28] : memref<8x128xf32, #tpu.memory_space<vmem>>, vector<8x128xf32>
    tpu.vector_store %arg5[%c0_27, %c0_28], %64 {strides = array<i32>} : memref<8x128xf32, #tpu.memory_space<vmem>>, vector<8x128xf32>,
    return
  }
  func.func @transform_0(%arg0: i32) -> (i32, i32) {
    %c0_i32 = arith.constant 0 : i32
    %c0_i32_0 = arith.constant 0 : i32
    return %arg0, %c0_i32 : i32, i32
  }
  func.func @transform_1(%arg0: i32) -> (i32, i32) {
    %c0_i32 = arith.constant 0 : i32
    %c0_i32_0 = arith.constant 0 : i32
    %c0_i32_1 = arith.constant 0 : i32
    return %c0_i32, %c0_i32_0 : i32, i32
  }
  func.func @transform_2(%arg0: i32) -> (i32, i32) {
    %c0_i32 = arith.constant 0 : i32
    %c0_i32_0 = arith.constant 0 : i32
    %c0_i32_1 = arith.constant 0 : i32
    return %c0_i32, %c0_i32_0 : i32, i32
  }
  func.func @transform_3(%arg0: i32) -> (i32, i32, i32) {
    %c0_i32 = arith.constant 0 : i32
    %c0_i32_0 = arith.constant 0 : i32
    %c0_i32_1 = arith.constant 0 : i32
    %c0_i32_2 = arith.constant 0 : i32
    return %c0_i32, %c0_i32_0, %c0_i32_1 : i32, i32, i32
  }
  func.func @transform_4(%arg0: i32) -> (i32, i32) {
    %c0_i32 = arith.constant 0 : i32
    %c0_i32_0 = arith.constant 0 : i32
    return %arg0, %c0_i32 : i32, i32
  }
}

</mosaic_0001>

<llo_original>
// kernel: mhae_forward.1
$region0: #{mhae_forward.1}
  #allocation0 [shape = 'u32[]', space=smem, size = 0x4, offset = 0x4, fixed_abs, tag = 'smem constant byte address 0x4 - core index']
  #allocation1 [shape = 'u32[144,128]{1,0:T(1,128)}', space=vmem, size = 0x12000, scoped, tag = 'internal scratch']
  %s0 = inlined_call_operand.hbm [shape: f32[8,32], index: 0, kind: input, shape index: {}]
  %s1 = inlined_call_operand.hbm [shape: f32[8,32], index: 1, kind: input, shape index: {}]
  %s2 = inlined_call_operand.hbm [shape: f32[8,128], index: 2, kind: input, shape index: {}]
  %s3 = inlined_call_operand.hbm [shape: f32[6,128,128], index: 3, kind: input, shape index: {}]
  %s4 = inlined_call_operand.vmem [shape: f32[8,128], index: 4, kind: output, shape index: {}]
  %s5 = sld [smem:[#allocation0]]
  $region42: #{mhae_forward.1} parent=0
    _
  %s7 = ssub.s32 1, %s5
  %s8 = scalar_select 0, %s7, %s5
  $region1: #{mhae_forward.1} parent=0
    #allocation2 [shape = 'u8[4096]{0}', space=vmem, size = 0x1000, scoped, tag = 'input window, operand 0, single buffered']
    #allocation3 [shape = 's32[1]{0}', space=sflag, size = 0x4, scoped, tag = 'scoped memory for mhae_forward.1']
    #allocation4 [shape = 'u8[4096]{0}', space=vmem, size = 0x1000, scoped, tag = 'input window, operand 1, single buffered']
    #allocation5 [shape = 's32[1]{0}', space=sflag, size = 0x4, scoped, tag = 'scoped memory for mhae_forward.1']
    #allocation6 [shape = 'u8[4096]{0}', space=vmem, size = 0x1000, scoped, tag = 'input window, operand 2, single buffered']
    #allocation7 [shape = 'u8[393216]{0}', space=vmem, size = 0x60000, scoped, tag = 'input window, operand 3, single buffered']
    #allocation8 [shape = 's32[1]{0}', space=sflag, size = 0x4, scoped, tag = 'scoped memory for mhae_forward.1']
    %9 = vsyncpa [#allocation3], 0
    %10 = vsyncpa [#allocation5], 0
    %11 = vsyncpa [#allocation8], 0
    // Predicated region
    $region2: #{mhae_forward.1} parent=1 // pred_check
      _
    $region3: #{mhae_forward.1} parent=1 // pred_check_branch
      %13 = sbr.rel (0) target = $region5
    $region4: #{mhae_forward.1} parent=1 // pred_region
      %s15 = ssub.s32 128, 128
      %16 = vsyncadd [#allocation3], %s15
      %s18 = sshll.u32 [#allocation2], 4
      %s19 = int_to_ptr.vmem [resolvable:$true] %s18
      %21 = dma.hbm_to_vmem [thread:$0]  %s0, 128, %s19, [#allocation3]
    $region5: #{mhae_forward.1} parent=1 // pred_fallthru
      _
    // Predicated region
    $region6: #{mhae_forward.1} parent=1 // pred_check
      _
    $region7: #{mhae_forward.1} parent=1 // pred_check_branch
      %23 = sbr.rel (0) target = $region9
    $region8: #{mhae_forward.1} parent=1 // pred_region
      %s25 = ssub.s32 128, 128
      %26 = vsyncadd [#allocation5], %s25
      %s28 = sshll.u32 [#allocation4], 4
      %s29 = int_to_ptr.vmem [resolvable:$true] %s28
      %31 = dma.hbm_to_vmem [thread:$0]  %s1, 128, %s29, [#allocation5]
    $region9: #{mhae_forward.1} parent=1 // pred_fallthru
      _
    // Predicated region
    $region10: #{mhae_forward.1} parent=1 // pred_check
      _
    $region11: #{mhae_forward.1} parent=1 // pred_check_branch
      %33 = sbr.rel (0) target = $region13
    $region12: #{mhae_forward.1} parent=1 // pred_region
      %s35 = ssub.s32 128, 128
      %36 = vsyncadd [#allocation5], %s35
      %s38 = sshll.u32 [#allocation6], 4
      %s39 = int_to_ptr.vmem [resolvable:$true] %s38
      %41 = dma.hbm_to_vmem [thread:$0]  %s2, 128, %s39, [#allocation5]
    $region13: #{mhae_forward.1} parent=1 // pred_fallthru
      _
    // Predicated region
    $region14: #{mhae_forward.1} parent=1 // pred_check
      _
    $region15: #{mhae_forward.1} parent=1 // pred_check_branch
      %43 = sbr.rel (0) target = $region17
    $region16: #{mhae_forward.1} parent=1 // pred_region
      %s45 = ssub.s32 12288, 12288
      %46 = vsyncadd [#allocation8], %s45
      %s47 = sshll.u32 [#allocation7], 4
      %s48 = int_to_ptr.vmem [resolvable:$true] %s47
      %53 = dma.hbm_to_vmem [thread:$0]  %s3, 12288, %s48, [#allocation8], 128, 128, 8
    $region17: #{mhae_forward.1} parent=1 // pred_fallthru
      _
    // Predicated region
    $region18: #{mhae_forward.1} parent=1 // pred_check
      _
    $region19: #{mhae_forward.1} parent=1 // pred_check_branch
      %55 = sbr.rel (0) target = $region21
    $region20: #{mhae_forward.1} parent=1 // pred_region
      %56 = dma.done [#allocation3], 128
    $region21: #{mhae_forward.1} parent=1 // pred_fallthru
      _
    // Predicated region
    $region22: #{mhae_forward.1} parent=1 // pred_check
      _
    $region23: #{mhae_forward.1} parent=1 // pred_check_branch
      %58 = sbr.rel (0) target = $region25
    $region24: #{mhae_forward.1} parent=1 // pred_region
      %59 = dma.done [#allocation5], 128
    $region25: #{mhae_forward.1} parent=1 // pred_fallthru
      _
    // Predicated region
    $region26: #{mhae_forward.1} parent=1 // pred_check
      _
    $region27: #{mhae_forward.1} parent=1 // pred_check_branch
      %61 = sbr.rel (0) target = $region29
    $region28: #{mhae_forward.1} parent=1 // pred_region
      %62 = dma.done [#allocation5], 128
    $region29: #{mhae_forward.1} parent=1 // pred_fallthru
      _
    // Predicated region
    $region30: #{mhae_forward.1} parent=1 // pred_check
      _
    $region31: #{mhae_forward.1} parent=1 // pred_check_branch
      %64 = sbr.rel (0) target = $region33
    $region32: #{mhae_forward.1} parent=1 // pred_region
      %65 = dma.done [#allocation8], 12288
    $region33: #{mhae_forward.1} parent=1 // pred_fallthru
      _
    %v66 = vld [vmem:[#allocation2] sm:$0xff]
    %v67 = vld [vmem:[#allocation4] sm:$0xff]
    %v68 = vlaneseq
    %v69 = vshrl.u32 %v68, 7
    %v70 = vsub.s32 0, %v69
    %v71 = vrot.slane %v67, %v70
    %v72 = vsub.f32 %v66, %v71
    %v73 = vlaneseq
    %v74 = vshrl.u32 %v73, 7
    %v75 = vsub.s32 1, %v74
    %v76 = vrot.slane %v67, %v75
    %v77 = vmul.f32 %v72, %v76
    %v78 = vld [vmem:[#allocation6] sm:$0xff]
    %v79 = vld [vmem:[#allocation7] sm:$0xff]
    %v80 = vld [vmem:[#allocation7 + $0x8] sm:$0xff]
    %v81 = vld [vmem:[#allocation7 + $0x10] sm:$0xff]
    %v82 = vld [vmem:[#allocation7 + $0x18] sm:$0xff]
    %v83 = vlaneseq
    %v84 = vshrl.u32 %v83, 7
    %v85 = vsub.s32 0, %v84
    %v86 = vrot.slane %v78, %v85
    %vm87 = vcmask 261120
    %v89 = vsel %vm87, %v77, 0
    %91 = vmatprep.subr.mxu0 0.0
    %92 = vmatpush1.msra.mxu0 0.0
    %93 = vmatprep.subr.mxu0 0.0
    %94 = vmatpush1.msra.mxu0 0.0
    %95 = vmatprep.subr.mxu0 0.0
    %96 = vmatpush1.msra.mxu0 0.0
    %97 = vmatprep.subr.mxu0 0.0
    %98 = vmatpush1.msra.mxu0 0.0
    %99 = vmatprep.subr.mxu0 0.0
    %100 = vmatpush1.msra.mxu0 0.0
    %101 = vmatprep.subr.mxu0 0.0
    %102 = vmatpush1.msra.mxu0 0.0
    %103 = vmatprep.subr.mxu0 0.0
    %104 = vmatpush1.msra.mxu0 0.0
    %105 = vmatprep.subr.mxu0 0.0
    %106 = vmatpush1.msra.mxu0 0.0
    %107 = vmatprep.subr.mxu0 0.0
    %108 = vmatpush1.msra.mxu0 0.0
    %109 = vmatprep.subr.mxu0 0.0
    %110 = vmatpush1.msra.mxu0 0.0
    %111 = vmatprep.subr.mxu0 0.0
    %112 = vmatpush1.msra.mxu0 0.0
    %113 = vmatprep.subr.mxu0 0.0
    %114 = vmatpush1.msra.mxu0 0.0
    %115 = vmatprep.subr.mxu0 0.0
    %116 = vmatpush1.msra.mxu0 %v82
    %117 = vmatprep.subr.mxu0 0.0
    %118 = vmatpush1.msra.mxu0 %v81
    %119 = vmatprep.subr.mxu0 0.0
    %120 = vmatpush1.msra.mxu0 %v80
    %121 = vmatprep.subr.mxu0 0.0
    %122 = vmatpush1.msra.mxu0 %v79
    %123 = vmatprep.subr.mxu0 0.0
    %124 = vmatpush2.msra.mxu0 0.0
    %125 = vmatprep.subr.mxu0 0.0
    %126 = vmatpush2.msra.mxu0 0.0
    %127 = vmatprep.subr.mxu0 0.0
    %128 = vmatpush2.msra.mxu0 0.0
    %129 = vmatprep.subr.mxu0 0.0
    %130 = vmatpush2.msra.mxu0 0.0
    %131 = vmatprep.subr.mxu0 0.0
    %132 = vmatpush2.msra.mxu0 0.0
    %133 = vmatprep.subr.mxu0 0.0
    %134 = vmatpush2.msra.mxu0 0.0
    %135 = vmatprep.subr.mxu0 0.0
    %136 = vmatpush2.msra.mxu0 0.0
    %137 = vmatprep.subr.mxu0 0.0
    %138 = vmatpush2.msra.mxu0 0.0
    %139 = vmatprep.subr.mxu0 0.0
    %140 = vmatpush2.msra.mxu0 0.0
    %141 = vmatprep.subr.mxu0 0.0
    %142 = vmatpush2.msra.mxu0 0.0
    %143 = vmatprep.subr.mxu0 0.0
    %144 = vmatpush2.msra.mxu0 0.0
    %145 = vmatprep.subr.mxu0 0.0
    %146 = vmatpush2.msra.mxu0 0.0
    %147 = vmatprep.subr.mxu0 0.0
    %148 = vmatpush2.msra.mxu0 0.0
    %149 = vmatprep.subr.mxu0 0.0
    %150 = vmatpush2.msra.mxu0 0.0
    %151 = vmatprep.subr.mxu0 0.0
    %152 = vmatpush2.msra.mxu0 0.0
    %153 = vmatprep.subr.mxu0 0.0
    %154 = vmatpush2.msra.mxu0 0.0
    %155 = vmatprep.mubr.f32.mxu0 0.0
    %156 = vmatmul.mubr.f32.gmra.mxu0 %v89
    %v157 = vpop.f32.mrf.mxu0
    %v158 = vadd.f32 %v86, %v157
    %v159 = vpop.f32.mrf.mxu0
    %160 = vdwg.mxu0
    %v161 = vmax.f32 %v158, 0.0
    %s162 = scalar_lea.vmem [#allocation7], 128
    %v163 = vld [vmem:[%s162] sm:$0xff]
    %v164 = vld [vmem:[%s162 + $0x8] sm:$0xff]
    %v165 = vld [vmem:[%s162 + $0x10] sm:$0xff]
    %v166 = vld [vmem:[%s162 + $0x18] sm:$0xff]
    %v167 = vld [vmem:[%s162 + $0x20] sm:$0xff]
    %v168 = vld [vmem:[%s162 + $0x28] sm:$0xff]
    %v169 = vld [vmem:[%s162 + $0x30] sm:$0xff]
    %v170 = vld [vmem:[%s162 + $0x38] sm:$0xff]
    %v171 = vld [vmem:[%s162 + $0x40] sm:$0xff]
    %v172 = vld [vmem:[%s162 + $0x48] sm:$0xff]
    %v173 = vld [vmem:[%s162 + $0x50] sm:$0xff]
    %v174 = vld [vmem:[%s162 + $0x58] sm:$0xff]
    %v175 = vld [vmem:[%s162 + $0x60] sm:$0xff]
    %v176 = vld [vmem:[%s162 + $0x68] sm:$0xff]
    %v177 = vld [vmem:[%s162 + $0x70] sm:$0xff]
    %v178 = vld [vmem:[%s162 + $0x78] sm:$0xff]
    %v179 = vlaneseq
    %v180 = vshrl.u32 %v179, 7
    %v181 = vsub.s32 1, %v180
    %v182 = vrot.slane %v78, %v181
    %183 = vmatprep.subr.mxu0 0.0
    %184 = vmatpush1.msra.mxu0 %v178
    %185 = vmatprep.subr.mxu0 0.0
    %186 = vmatpush1.msra.mxu0 %v177
    %187 = vmatprep.subr.mxu0 0.0
    %188 = vmatpush1.msra.mxu0 %v176
    %189 = vmatprep.subr.mxu0 0.0
    %190 = vmatpush1.msra.mxu0 %v175
    %191 = vmatprep.subr.mxu0 0.0
    %192 = vmatpush1.msra.mxu0 %v174
    %193 = vmatprep.subr.mxu0 0.0
    %194 = vmatpush1.msra.mxu0 %v173
    %195 = vmatprep.subr.mxu0 0.0
    %196 = vmatpush1.msra.mxu0 %v172
    %197 = vmatprep.subr.mxu0 0.0
    %198 = vmatpush1.msra.mxu0 %v171
    %199 = vmatprep.subr.mxu0 0.0
    %200 = vmatpush1.msra.mxu0 %v170
    %201 = vmatprep.subr.mxu0 0.0
    %202 = vmatpush1.msra.mxu0 %v169
    %203 = vmatprep.subr.mxu0 0.0
    %204 = vmatpush1.msra.mxu0 %v168
    %205 = vmatprep.subr.mxu0 0.0
    %206 = vmatpush1.msra.mxu0 %v167
    %207 = vmatprep.subr.mxu0 0.0
    %208 = vmatpush1.msra.mxu0 %v166
    %209 = vmatprep.subr.mxu0 0.0
    %210 = vmatpush1.msra.mxu0 %v165
    %211 = vmatprep.subr.mxu0 0.0
    %212 = vmatpush1.msra.mxu0 %v164
    %213 = vmatprep.subr.mxu0 0.0
    %214 = vmatpush1.msra.mxu0 %v163
    %215 = vmatprep.subr.mxu0 0.0
    %216 = vmatpush2.msra.mxu0 0.0
    %217 = vmatprep.subr.mxu0 0.0
    %218 = vmatpush2.msra.mxu0 0.0
    %219 = vmatprep.subr.mxu0 0.0
    %220 = vmatpush2.msra.mxu0 0.0
    %221 = vmatprep.subr.mxu0 0.0
    %222 = vmatpush2.msra.mxu0 0.0
    %223 = vmatprep.subr.mxu0 0.0
    %224 = vmatpush2.msra.mxu0 0.0
    %225 = vmatprep.subr.mxu0 0.0
    %226 = vmatpush2.msra.mxu0 0.0
    %227 = vmatprep.subr.mxu0 0.0
    %228 = vmatpush2.msra.mxu0 0.0
    %229 = vmatprep.subr.mxu0 0.0
    %230 = vmatpush2.msra.mxu0 0.0
    %231 = vmatprep.subr.mxu0 0.0
    %232 = vmatpush2.msra.mxu0 0.0
    %233 = vmatprep.subr.mxu0 0.0
    %234 = vmatpush2.msra.mxu0 0.0
    %235 = vmatprep.subr.mxu0 0.0
    %236 = vmatpush2.msra.mxu0 0.0
    %237 = vmatprep.subr.mxu0 0.0
    %238 = vmatpush2.msra.mxu0 0.0
    %239 = vmatprep.subr.mxu0 0.0
    %240 = vmatpush2.msra.mxu0 0.0
    %241 = vmatprep.subr.mxu0 0.0
    %242 = vmatpush2.msra.mxu0 0.0
    %243 = vmatprep.subr.mxu0 0.0
    %244 = vmatpush2.msra.mxu0 0.0
    %245 = vmatprep.subr.mxu0 0.0
    %246 = vmatpush2.msra.mxu0 0.0
    %247 = vmatprep.mubr.f32.mxu0 0.0
    %248 = vmatmul.mubr.f32.gmra.mxu0 %v161
    %v249 = vpop.f32.mrf.mxu0
    %v250 = vadd.f32 %v182, %v249
    %v251 = vpop.f32.mrf.mxu0
    %252 = vdwg.mxu0
    %s253 = scalar_lea.vmem [#allocation7], 256
    %v254 = vld [vmem:[%s253] sm:$0xff]
    %v255 = vld [vmem:[%s253 + $0x8] sm:$0xff]
    %v256 = vld [vmem:[%s253 + $0x10] sm:$0xff]
    %v257 = vld [vmem:[%s253 + $0x18] sm:$0xff]
    %v258 = vld [vmem:[%s253 + $0x20] sm:$0xff]
    %v259 = vld [vmem:[%s253 + $0x28] sm:$0xff]
    %v260 = vld [vmem:[%s253 + $0x30] sm:$0xff]
    %v261 = vld [vmem:[%s253 + $0x38] sm:$0xff]
    %v262 = vld [vmem:[%s253 + $0x40] sm:$0xff]
    %v263 = vld [vmem:[%s253 + $0x48] sm:$0xff]
    %v264 = vld [vmem:[%s253 + $0x50] sm:$0xff]
    %v265 = vld [vmem:[%s253 + $0x58] sm:$0xff]
    %v266 = vld [vmem:[%s253 + $0x60] sm:$0xff]
    %v267 = vld [vmem:[%s253 + $0x68] sm:$0xff]
    %v268 = vld [vmem:[%s253 + $0x70] sm:$0xff]
    %v269 = vld [vmem:[%s253 + $0x78] sm:$0xff]
    %v270 = vlaneseq
    %v271 = vshrl.u32 %v270, 7
    %v272 = vsub.s32 2, %v271
    %v273 = vrot.slane %v78, %v272
    %274 = vmatprep.subr.mxu0 0.0
    %275 = vmatpush1.msra.mxu0 %v269
    %276 = vmatprep.subr.mxu0 0.0
    %277 = vmatpush1.msra.mxu0 %v268
    %278 = vmatprep.subr.mxu0 0.0
    %279 = vmatpush1.msra.mxu0 %v267
    %280 = vmatprep.subr.mxu0 0.0
    %281 = vmatpush1.msra.mxu0 %v266
    %282 = vmatprep.subr.mxu0 0.0
    %283 = vmatpush1.msra.mxu0 %v265
    %284 = vmatprep.subr.mxu0 0.0
    %285 = vmatpush1.msra.mxu0 %v264
    %286 = vmatprep.subr.mxu0 0.0
    %287 = vmatpush1.msra.mxu0 %v263
    %288 = vmatprep.subr.mxu0 0.0
    %289 = vmatpush1.msra.mxu0 %v262
    %290 = vmatprep.subr.mxu0 0.0
    %291 = vmatpush1.msra.mxu0 %v261
    %292 = vmatprep.subr.mxu0 0.0
    %293 = vmatpush1.msra.mxu0 %v260
    %294 = vmatprep.subr.mxu0 0.0
    %295 = vmatpush1.msra.mxu0 %v259
    %296 = vmatprep.subr.mxu0 0.0
    %297 = vmatpush1.msra.mxu0 %v258
    %298 = vmatprep.subr.mxu0 0.0
    %299 = vmatpush1.msra.mxu0 %v257
    %300 = vmatprep.subr.mxu0 0.0
    %301 = vmatpush1.msra.mxu0 %v256
    %302 = vmatprep.subr.mxu0 0.0
    %303 = vmatpush1.msra.mxu0 %v255
    %304 = vmatprep.subr.mxu0 0.0
    %305 = vmatpush1.msra.mxu0 %v254
    %306 = vmatprep.subr.mxu0 0.0
    %307 = vmatpush2.msra.mxu0 0.0
    %308 = vmatprep.subr.mxu0 0.0
    %309 = vmatpush2.msra.mxu0 0.0
    %310 = vmatprep.subr.mxu0 0.0
    %311 = vmatpush2.msra.mxu0 0.0
    %312 = vmatprep.subr.mxu0 0.0
    %313 = vmatpush2.msra.mxu0 0.0
    %314 = vmatprep.subr.mxu0 0.0
    %315 = vmatpush2.msra.mxu0 0.0
    %316 = vmatprep.subr.mxu0 0.0
    %317 = vmatpush2.msra.mxu0 0.0
    %318 = vmatprep.subr.mxu0 0.0
    %319 = vmatpush2.msra.mxu0 0.0
    %320 = vmatprep.subr.mxu0 0.0
    %321 = vmatpush2.msra.mxu0 0.0
    %322 = vmatprep.subr.mxu0 0.0
    %323 = vmatpush2.msra.mxu0 0.0
    %324 = vmatprep.subr.mxu0 0.0
    %325 = vmatpush2.msra.mxu0 0.0
    %326 = vmatprep.subr.mxu0 0.0
    %327 = vmatpush2.msra.mxu0 0.0
    %328 = vmatprep.subr.mxu0 0.0
    %329 = vmatpush2.msra.mxu0 0.0
    %330 = vmatprep.subr.mxu0 0.0
    %331 = vmatpush2.msra.mxu0 0.0
    %332 = vmatprep.subr.mxu0 0.0
    %333 = vmatpush2.msra.mxu0 0.0
    %334 = vmatprep.subr.mxu0 0.0
    %335 = vmatpush2.msra.mxu0 0.0
    %336 = vmatprep.subr.mxu0 0.0
    %337 = vmatpush2.msra.mxu0 0.0
    %338 = vmatprep.mubr.f32.mxu0 0.0
    %339 = vmatmul.mubr.f32.gmra.mxu0 %v250
    %v340 = vpop.f32.mrf.mxu0
    %v341 = vadd.f32 %v273, %v340
    %v342 = vpop.f32.mrf.mxu0
    %343 = vdwg.mxu0
    %v344 = vmax.f32 %v341, 0.0
    %s345 = scalar_lea.vmem [#allocation7], 384
    %v346 = vld [vmem:[%s345] sm:$0xff]
    %v347 = vld [vmem:[%s345 + $0x8] sm:$0xff]
    %v348 = vld [vmem:[%s345 + $0x10] sm:$0xff]
    %v349 = vld [vmem:[%s345 + $0x18] sm:$0xff]
    %v350 = vld [vmem:[%s345 + $0x20] sm:$0xff]
    %v351 = vld [vmem:[%s345 + $0x28] sm:$0xff]
    %v352 = vld [vmem:[%s345 + $0x30] sm:$0xff]
    %v353 = vld [vmem:[%s345 + $0x38] sm:$0xff]
    %v354 = vld [vmem:[%s345 + $0x40] sm:$0xff]
    %v355 = vld [vmem:[%s345 + $0x48] sm:$0xff]
    %v356 = vld [vmem:[%s345 + $0x50] sm:$0xff]
    %v357 = vld [vmem:[%s345 + $0x58] sm:$0xff]
    %v358 = vld [vmem:[%s345 + $0x60] sm:$0xff]
    %v359 = vld [vmem:[%s345 + $0x68] sm:$0xff]
    %v360 = vld [vmem:[%s345 + $0x70] sm:$0xff]
    %v361 = vld [vmem:[%s345 + $0x78] sm:$0xff]
    %v362 = vlaneseq
    %v363 = vshrl.u32 %v362, 7
    %v364 = vsub.s32 3, %v363
    %v365 = vrot.slane %v78, %v364
    %366 = vmatprep.subr.mxu0 0.0
    %367 = vmatpush1.msra.mxu0 %v361
    %368 = vmatprep.subr.mxu0 0.0
    %369 = vmatpush1.msra.mxu0 %v360
    %370 = vmatprep.subr.mxu0 0.0
    %371 = vmatpush1.msra.mxu0 %v359
    %372 = vmatprep.subr.mxu0 0.0
    %373 = vmatpush1.msra.mxu0 %v358
    %374 = vmatprep.subr.mxu0 0.0
    %375 = vmatpush1.msra.mxu0 %v357
    %376 = vmatprep.subr.mxu0 0.0
    %377 = vmatpush1.msra.mxu0 %v356
    %378 = vmatprep.subr.mxu0 0.0
    %379 = vmatpush1.msra.mxu0 %v355
    %380 = vmatprep.subr.mxu0 0.0
    %381 = vmatpush1.msra.mxu0 %v354
    %382 = vmatprep.subr.mxu0 0.0
    %383 = vmatpush1.msra.mxu0 %v353
    %384 = vmatprep.subr.mxu0 0.0
    %385 = vmatpush1.msra.mxu0 %v352
    %386 = vmatprep.subr.mxu0 0.0
    %387 = vmatpush1.msra.mxu0 %v351
    %388 = vmatprep.subr.mxu0 0.0
    %389 = vmatpush1.msra.mxu0 %v350
    %390 = vmatprep.subr.mxu0 0.0
    %391 = vmatpush1.msra.mxu0 %v349
    %392 = vmatprep.subr.mxu0 0.0
    %393 = vmatpush1.msra.mxu0 %v348
    %394 = vmatprep.subr.mxu0 0.0
    %395 = vmatpush1.msra.mxu0 %v347
    %396 = vmatprep.subr.mxu0 0.0
    %397 = vmatpush1.msra.mxu0 %v346
    %398 = vmatprep.subr.mxu0 0.0
    %399 = vmatpush2.msra.mxu0 0.0
    %400 = vmatprep.subr.mxu0 0.0
    %401 = vmatpush2.msra.mxu0 0.0
    %402 = vmatprep.subr.mxu0 0.0
    %403 = vmatpush2.msra.mxu0 0.0
    %404 = vmatprep.subr.mxu0 0.0
    %405 = vmatpush2.msra.mxu0 0.0
    %406 = vmatprep.subr.mxu0 0.0
    %407 = vmatpush2.msra.mxu0 0.0
    %408 = vmatprep.subr.mxu0 0.0
    %409 = vmatpush2.msra.mxu0 0.0
    %410 = vmatprep.subr.mxu0 0.0
    %411 = vmatpush2.msra.mxu0 0.0
    %412 = vmatprep.subr.mxu0 0.0
    %413 = vmatpush2.msra.mxu0 0.0
    %414 = vmatprep.subr.mxu0 0.0
    %415 = vmatpush2.msra.mxu0 0.0
    %416 = vmatprep.subr.mxu0 0.0
    %417 = vmatpush2.msra.mxu0 0.0
    %418 = vmatprep.subr.mxu0 0.0
    %419 = vmatpush2.msra.mxu0 0.0
    %420 = vmatprep.subr.mxu0 0.0
    %421 = vmatpush2.msra.mxu0 0.0
    %422 = vmatprep.subr.mxu0 0.0
    %423 = vmatpush2.msra.mxu0 0.0
    %424 = vmatprep.subr.mxu0 0.0
    %425 = vmatpush2.msra.mxu0 0.0
    %426 = vmatprep.subr.mxu0 0.0
    %427 = vmatpush2.msra.mxu0 0.0
    %428 = vmatprep.subr.mxu0 0.0
    %429 = vmatpush2.msra.mxu0 0.0
    %430 = vmatprep.mubr.f32.mxu0 0.0
    %431 = vmatmul.mubr.f32.gmra.mxu0 %v344
    %v432 = vpop.f32.mrf.mxu0
    %v433 = vadd.f32 %v365, %v432
    %v434 = vpop.f32.mrf.mxu0
    %435 = vdwg.mxu0
    %v436 = vlaneseq
    %v437 = vshrl.u32 %v436, 7
    %v438 = vsub.s32 4, %v437
    %v439 = vrot.slane %v78, %v438
    %v440 = vmul.f32 %v433, %v439
    %v441 = vlaneseq
    %v442 = vshrl.u32 %v441, 7
    %v443 = vsub.s32 5, %v442
    %v444 = vrot.slane %v78, %v443
    %v445 = vadd.f32 %v440, %v444
    %v446 = vmul.f32 %v250, %v250
    %447 = vadd.xlane.f32.xlu0 %v446
    %v448 = vpop.xlane.xlu0 %447
    %v449 = vrsqrt.pop %v448
    %v450 = vmul.f32 %v250, %v449
    %s451 = scalar_lea.vmem [#allocation7], 512
    %v452 = vld [vmem:[%s451] sm:$0xff]
    %v453 = vld [vmem:[%s451 + $0x8] sm:$0xff]
    %v454 = vld [vmem:[%s451 + $0x10] sm:$0xff]
    %v455 = vld [vmem:[%s451 + $0x18] sm:$0xff]
    %v456 = vld [vmem:[%s451 + $0x20] sm:$0xff]
    %v457 = vld [vmem:[%s451 + $0x28] sm:$0xff]
    %v458 = vld [vmem:[%s451 + $0x30] sm:$0xff]
    %v459 = vld [vmem:[%s451 + $0x38] sm:$0xff]
    %v460 = vld [vmem:[%s451 + $0x40] sm:$0xff]
    %v461 = vld [vmem:[%s451 + $0x48] sm:$0xff]
    %v462 = vld [vmem:[%s451 + $0x50] sm:$0xff]
    %v463 = vld [vmem:[%s451 + $0x58] sm:$0xff]
    %v464 = vld [vmem:[%s451 + $0x60] sm:$0xff]
    %v465 = vld [vmem:[%s451 + $0x68] sm:$0xff]
    %v466 = vld [vmem:[%s451 + $0x70] sm:$0xff]
    %v467 = vld [vmem:[%s451 + $0x78] sm:$0xff]
    %v468 = vlaneseq
    %v469 = vshrl.u32 %v468, 7
    %v470 = vsub.s32 6, %v469
    %v471 = vrot.slane %v78, %v470
    %472 = vmatprep.subr.mxu0 0.0
    %473 = vmatpush1.msra.mxu0 %v467
    %474 = vmatprep.subr.mxu0 0.0
    %475 = vmatpush1.msra.mxu0 %v466
    %476 = vmatprep.subr.mxu0 0.0
    %477 = vmatpush1.msra.mxu0 %v465
    %478 = vmatprep.subr.mxu0 0.0
    %479 = vmatpush1.msra.mxu0 %v464
    %480 = vmatprep.subr.mxu0 0.0
    %481 = vmatpush1.msra.mxu0 %v463
    %482 = vmatprep.subr.mxu0 0.0
    %483 = vmatpush1.msra.mxu0 %v462
    %484 = vmatprep.subr.mxu0 0.0
    %485 = vmatpush1.msra.mxu0 %v461
    %486 = vmatprep.subr.mxu0 0.0
    %487 = vmatpush1.msra.mxu0 %v460
    %488 = vmatprep.subr.mxu0 0.0
    %489 = vmatpush1.msra.mxu0 %v459
    %490 = vmatprep.subr.mxu0 0.0
    %491 = vmatpush1.msra.mxu0 %v458
    %492 = vmatprep.subr.mxu0 0.0
    %493 = vmatpush1.msra.mxu0 %v457
    %494 = vmatprep.subr.mxu0 0.0
    %495 = vmatpush1.msra.mxu0 %v456
    %496 = vmatprep.subr.mxu0 0.0
    %497 = vmatpush1.msra.mxu0 %v455
    %498 = vmatprep.subr.mxu0 0.0
    %499 = vmatpush1.msra.mxu0 %v454
    %500 = vmatprep.subr.mxu0 0.0
    %501 = vmatpush1.msra.mxu0 %v453
    %502 = vmatprep.subr.mxu0 0.0
    %503 = vmatpush1.msra.mxu0 %v452
    %504 = vmatprep.subr.mxu0 0.0
    %505 = vmatpush2.msra.mxu0 0.0
    %506 = vmatprep.subr.mxu0 0.0
    %507 = vmatpush2.msra.mxu0 0.0
    %508 = vmatprep.subr.mxu0 0.0
    %509 = vmatpush2.msra.mxu0 0.0
    %510 = vmatprep.subr.mxu0 0.0
    %511 = vmatpush2.msra.mxu0 0.0
    %512 = vmatprep.subr.mxu0 0.0
    %513 = vmatpush2.msra.mxu0 0.0
    %514 = vmatprep.subr.mxu0 0.0
    %515 = vmatpush2.msra.mxu0 0.0
    %516 = vmatprep.subr.mxu0 0.0
    %517 = vmatpush2.msra.mxu0 0.0
    %518 = vmatprep.subr.mxu0 0.0
    %519 = vmatpush2.msra.mxu0 0.0
    %520 = vmatprep.subr.mxu0 0.0
    %521 = vmatpush2.msra.mxu0 0.0
    %522 = vmatprep.subr.mxu0 0.0
    %523 = vmatpush2.msra.mxu0 0.0
    %524 = vmatprep.subr.mxu0 0.0
    %525 = vmatpush2.msra.mxu0 0.0
    %526 = vmatprep.subr.mxu0 0.0
    %527 = vmatpush2.msra.mxu0 0.0
    %528 = vmatprep.subr.mxu0 0.0
    %529 = vmatpush2.msra.mxu0 0.0
    %530 = vmatprep.subr.mxu0 0.0
    %531 = vmatpush2.msra.mxu0 0.0
    %532 = vmatprep.subr.mxu0 0.0
    %533 = vmatpush2.msra.mxu0 0.0
    %534 = vmatprep.subr.mxu0 0.0
    %535 = vmatpush2.msra.mxu0 0.0
    %536 = vmatprep.mubr.f32.mxu0 0.0
    %537 = vmatmul.mubr.f32.gmra.mxu0 %v450
    %v538 = vpop.f32.mrf.mxu0
    %v539 = vadd.f32 %v471, %v538
    %v540 = vpop.f32.mrf.mxu0
    %541 = vdwg.mxu0
    %v542 = vmax.f32 %v539, 0.0
    %s543 = scalar_lea.vmem [#allocation7], 640
    %v544 = vld [vmem:[%s543] sm:$0xff]
    %v545 = vld [vmem:[%s543 + $0x8] sm:$0xff]
    %v546 = vld [vmem:[%s543 + $0x10] sm:$0xff]
    %v547 = vld [vmem:[%s543 + $0x18] sm:$0xff]
    %v548 = vld [vmem:[%s543 + $0x20] sm:$0xff]
    %v549 = vld [vmem:[%s543 + $0x28] sm:$0xff]
    %v550 = vld [vmem:[%s543 + $0x30] sm:$0xff]
    %v551 = vld [vmem:[%s543 + $0x38] sm:$0xff]
    %v552 = vld [vmem:[%s543 + $0x40] sm:$0xff]
    %v553 = vld [vmem:[%s543 + $0x48] sm:$0xff]
    %v554 = vld [vmem:[%s543 + $0x50] sm:$0xff]
    %v555 = vld [vmem:[%s543 + $0x58] sm:$0xff]
    %v556 = vld [vmem:[%s543 + $0x60] sm:$0xff]
    %v557 = vld [vmem:[%s543 + $0x68] sm:$0xff]
    %v558 = vld [vmem:[%s543 + $0x70] sm:$0xff]
    %v559 = vld [vmem:[%s543 + $0x78] sm:$0xff]
    %v560 = vlaneseq
    %v561 = vshrl.u32 %v560, 7
    %v562 = vsub.s32 7, %v561
    %v563 = vrot.slane %v78, %v562
    %564 = vmatprep.subr.mxu0 0.0
    %565 = vmatpush1.msra.mxu0 %v559
    %566 = vmatprep.subr.mxu0 0.0
    %567 = vmatpush1.msra.mxu0 %v558
    %568 = vmatprep.subr.mxu0 0.0
    %569 = vmatpush1.msra.mxu0 %v557
    %570 = vmatprep.subr.mxu0 0.0
    %571 = vmatpush1.msra.mxu0 %v556
    %572 = vmatprep.subr.mxu0 0.0
    %573 = vmatpush1.msra.mxu0 %v555
    %574 = vmatprep.subr.mxu0 0.0
    %575 = vmatpush1.msra.mxu0 %v554
    %576 = vmatprep.subr.mxu0 0.0
    %577 = vmatpush1.msra.mxu0 %v553
    %578 = vmatprep.subr.mxu0 0.0
    %579 = vmatpush1.msra.mxu0 %v552
    %580 = vmatprep.subr.mxu0 0.0
    %581 = vmatpush1.msra.mxu0 %v551
    %582 = vmatprep.subr.mxu0 0.0
    %583 = vmatpush1.msra.mxu0 %v550
    %584 = vmatprep.subr.mxu0 0.0
    %585 = vmatpush1.msra.mxu0 %v549
    %586 = vmatprep.subr.mxu0 0.0
    %587 = vmatpush1.msra.mxu0 %v548
    %588 = vmatprep.subr.mxu0 0.0
    %589 = vmatpush1.msra.mxu0 %v547
    %590 = vmatprep.subr.mxu0 0.0
    %591 = vmatpush1.msra.mxu0 %v546
    %592 = vmatprep.subr.mxu0 0.0
    %593 = vmatpush1.msra.mxu0 %v545
    %594 = vmatprep.subr.mxu0 0.0
    %595 = vmatpush1.msra.mxu0 %v544
    %596 = vmatprep.subr.mxu0 0.0
    %597 = vmatpush2.msra.mxu0 0.0
    %598 = vmatprep.subr.mxu0 0.0
    %599 = vmatpush2.msra.mxu0 0.0
    %600 = vmatprep.subr.mxu0 0.0
    %601 = vmatpush2.msra.mxu0 0.0
    %602 = vmatprep.subr.mxu0 0.0
    %603 = vmatpush2.msra.mxu0 0.0
    %604 = vmatprep.subr.mxu0 0.0
    %605 = vmatpush2.msra.mxu0 0.0
    %606 = vmatprep.subr.mxu0 0.0
    %607 = vmatpush2.msra.mxu0 0.0
    %608 = vmatprep.subr.mxu0 0.0
    %609 = vmatpush2.msra.mxu0 0.0
    %610 = vmatprep.subr.mxu0 0.0
    %611 = vmatpush2.msra.mxu0 0.0
    %612 = vmatprep.subr.mxu0 0.0
    %613 = vmatpush2.msra.mxu0 0.0
    %614 = vmatprep.subr.mxu0 0.0
    %615 = vmatpush2.msra.mxu0 0.0
    %616 = vmatprep.subr.mxu0 0.0
    %617 = vmatpush2.msra.mxu0 0.0
    %618 = vmatprep.subr.mxu0 0.0
    %619 = vmatpush2.msra.mxu0 0.0
    %620 = vmatprep.subr.mxu0 0.0
    %621 = vmatpush2.msra.mxu0 0.0
    %622 = vmatprep.subr.mxu0 0.0
    %623 = vmatpush2.msra.mxu0 0.0
    %624 = vmatprep.subr.mxu0 0.0
    %625 = vmatpush2.msra.mxu0 0.0
    %626 = vmatprep.subr.mxu0 0.0
    %627 = vmatpush2.msra.mxu0 0.0
    %628 = vmatprep.mubr.f32.mxu0 0.0
    %629 = vmatmul.mubr.f32.gmra.mxu0 %v542
    %v630 = vpop.f32.mrf.mxu0
    %v631 = vadd.f32 %v563, %v630
    %v632 = vpop.f32.mrf.mxu0
    %633 = vdwg.mxu0
    %v634 = vadd.f32 %v450, %v445
    %v635 = vadd.f32 %v634, %v631
    %636 = vst [vmem:[%s4] sm:$0xff] %v635
    // Predicated region
    $region34: #{mhae_forward.1} parent=1 // pred_check
      _
    $region35: #{mhae_forward.1} parent=1 // pred_check_branch
      %638 = sbr.rel (0) target = $region37
    $region36: #{mhae_forward.1} parent=1 // pred_region
      _
    $region37: #{mhae_forward.1} parent=1 // pred_fallthru
      _
    // Predicated region
    $region38: #{mhae_forward.1} parent=1 // pred_check
      _
    $region39: #{mhae_forward.1} parent=1 // pred_check_branch
      %640 = sbr.rel (0) target = $region41
    $region40: #{mhae_forward.1} parent=1 // pred_region
      _
    $region41: #{mhae_forward.1} parent=1 // pred_fallthru
      _
    %641 = vsyncpa [#allocation3], 1
    %642 = vsyncpa [#allocation5], 1
    %643 = vsyncpa [#allocation8], 1

</llo_original>
